<compile_context>
chip_gen: v7x
topology: tpu7x:2x2x1
jax: 0.10.0
libtpu: 0.0.40
codegen_flags: <defaults>
</compile_context>

<pallas_src>
import jax
import jax.numpy as jnp
from jax.experimental import pallas as pl
from jax.experimental.pallas import tpu as pltpu

HIDDEN_SIZE = 64
OUTPUT_SIZE = 2


def _mlp_kernel(x_ref, w1_ref, b1_ref, w2_ref, b2_ref, o_ref):
    # x_ref: [tm, P*D_in], w1: [P*D_in, P*H], b1: [1, P*H],
    # w2: [P*H, P*D_out], b2: [1, P*D_out], o: [tm, P*D_out]
    h = jnp.dot(x_ref[...], w1_ref[...], preferred_element_type=jnp.float32)
    h = jnp.maximum(h + b1_ref[...], 0.0)                 # bias + ReLU (f32)
    y = jnp.dot(h.astype(w2_ref.dtype), w2_ref[...],
                preferred_element_type=jnp.float32)
    o_ref[...] = (y + b2_ref[...]).astype(o_ref.dtype)


def _round_up(x, m):
    return ((x + m - 1) // m) * m


def _cdiv(a, b):
    return -(-a // b)


def _pick_pack(m_rows, d_in):
    """Largest power-of-two row-pack factor p with p*d_in == lane-dense width
    and p | M, so the packed view is a free row-major reshape (no pad/copy)."""
    if d_in > 128 or 128 % d_in != 0:
        return 1
    p = 128 // d_in                      # divisors of 128 are powers of two
    while p > 1 and m_rows % p != 0:
        p //= 2
    return p


def _auto_tile(mp_rows, lane_width, itemsize):
    """Tile size in *packed* rows."""
    if mp_rows < 256:
        return mp_rows                   # single full-extent block
    # >= 2 grid steps so v7x's second TensorCore gets work via "parallel" ...
    two_steps = _round_up(_cdiv(mp_rows, 2), 8)
    # ... capped at ~2 MiB of x per step (double-buffered ~4 MiB) so the
    # ~0.35 us/step overhead is amortized even at v7x HBM bandwidth.
    cap_rows = max(8, _round_up((2 * 1024 * 1024) // (lane_width * itemsize), 8))
    return int(max(8, min(two_steps, cap_rows)))


def ex_mlp_forward(x, w1, b1, w2, b2, *, tm=None, compute_dtype=None):
    """x: [B, S, D_in] -> [B, S, D_out]; fused 2-layer MLP in one Pallas call.

    tm:            rows-per-tile in *packed* rows (auto-tuned if None).
    compute_dtype: optional cast of x/W1/W2 (e.g. jnp.bfloat16).  NOTE: the
                   x cast is a separate XLA op (extra HBM pass over x); only
                   worth it if the producer already emits that dtype.
    """
    B, S, d_in = x.shape
    hidden = w1.shape[1]
    d_out = w2.shape[1]
    out_dtype = x.dtype

    if compute_dtype is not None:
        x = x.astype(compute_dtype)
        w1 = w1.astype(compute_dtype)
        w2 = w2.astype(compute_dtype)

    M = B * S
    pack = _pick_pack(M, d_in)
    Mp = M // pack
    Kp = pack * d_in
    Hp = pack * hidden
    Op = pack * d_out

    # Free row-major reshape: `pack` consecutive rows per 128-lane row.
    x2d = x.reshape(Mp, Kp)

    if pack > 1:
        # Block-diagonal weights keep each packed sub-row independent, so the
        # packed matmul is exactly `pack` copies of the original per-row MLP.
        w1_k = jnp.kron(jnp.eye(pack, dtype=w1.dtype), w1)      # [Kp, Hp]
        w2_k = jnp.kron(jnp.eye(pack, dtype=w2.dtype), w2)      # [Hp, Op]
        b1_k = jnp.tile(b1.reshape(1, hidden), (1, pack)).astype(jnp.float32)
        b2_k = jnp.tile(b2.reshape(1, d_out), (1, pack)).astype(jnp.float32)
    else:
        w1_k, w2_k = w1, w2
        b1_k = b1.reshape(1, hidden).astype(jnp.float32)
        b2_k = b2.reshape(1, d_out).astype(jnp.float32)

    itemsize = jnp.dtype(x2d.dtype).itemsize
    if tm is None:
        tm = _auto_tile(Mp, Kp, itemsize)
    tm = int(tm)
    if tm >= Mp:
        tm = Mp                            # single full-extent block (any row count)
    else:
        tm = max(8, _round_up(tm, 8))      # multi-step: 8-aligned block rows
    n_steps = _cdiv(Mp, tm)                # ragged trailing block: bounded writes

    cost = pl.CostEstimate(
        flops=2 * M * (d_in * hidden + hidden * d_out),
        transcendentals=0,
        bytes_accessed=(x2d.size * itemsize
                        + w1_k.size * jnp.dtype(w1_k.dtype).itemsize
                        + w2_k.size * jnp.dtype(w2_k.dtype).itemsize
                        + b1_k.size * 4 + b2_k.size * 4
                        + Mp * Op * jnp.dtype(out_dtype).itemsize),
    )

    out2d = pl.pallas_call(
        _mlp_kernel,
        out_shape=jax.ShapeDtypeStruct((Mp, Op), out_dtype),
        grid_spec=pl.GridSpec(
            grid=(n_steps,),
            in_specs=[
                pl.BlockSpec((tm, Kp), lambda i: (i, 0)),       # x rows (streamed)
                pl.BlockSpec((Kp, Hp), lambda i: (0, 0)),       # W1 (VMEM-resident)
                pl.BlockSpec((1, Hp), lambda i: (0, 0)),        # b1
                pl.BlockSpec((Hp, Op), lambda i: (0, 0)),       # W2
                pl.BlockSpec((1, Op), lambda i: (0, 0)),        # b2
            ],
            out_specs=pl.BlockSpec((tm, Op), lambda i: (i, 0)),
        ),
        compiler_params=pltpu.CompilerParams(
            dimension_semantics=("parallel",)),
        cost_estimate=cost,
    )(x2d, w1_k, b1_k, w2_k, b2_k)

    # Free row-major reshape back: packed [Mp, pack*d_out] -> [B, S, d_out].
    return out2d.reshape(B, S, d_out)


def init_params(key, input_size, hidden_size, output_size):
    """Xavier-normal weights (matching torch.nn.init.xavier_normal_) and zero
    biases, matching MatMul's parameter shapes."""
    k1, k2 = jax.random.split(key)

    def xavier_normal(k, fan_in, fan_out):
        std = (2.0 / (fan_in + fan_out)) ** 0.5
        return std * jax.random.normal(k, (fan_in, fan_out), dtype=jnp.float32)

    w1 = xavier_normal(k1, input_size, hidden_size)
    b1 = jnp.zeros((1, 1, hidden_size), dtype=jnp.float32)
    w2 = xavier_normal(k2, hidden_size, output_size)
    b2 = jnp.zeros((1, 1, output_size), dtype=jnp.float32)
    return w1, b1, w2, b2


def _reference(x, w1, b1, w2, b2):
    return jnp.maximum(x @ w1 + b1, 0.0) @ w2 + b2


if __name__ == "__main__":
    key = jax.random.PRNGKey(0)
    kx1, kx2, kx3, kp = jax.random.split(key, 4)

    INPUT_SIZE = 32
    w1, b1, w2, b2 = init_params(kp, INPUT_SIZE, HIDDEN_SIZE, OUTPUT_SIZE)

    # 1) small shape -> pack=4, single full-extent block (Mp = 4, lane-dense)
    B, S = 2, 8
    x = jax.random.normal(kx1, (B, S, INPUT_SIZE), dtype=jnp.float32)
    out = jax.block_until_ready(ex_mlp_forward(x, w1, b1, w2, b2))
    ref = _reference(x, w1, b1, w2, b2)
    assert out.shape == (B, S, OUTPUT_SIZE)
    assert jnp.allclose(out, ref, atol=1e-5, rtol=1e-5)

    # 2) M = 21 (odd) -> pack falls back to 1, single full-extent block,
    #    still no pad / no slice / no copies anywhere in the wrapper
    B2, S2 = 3, 7
    x2 = jax.random.normal(kx2, (B2, S2, INPUT_SIZE), dtype=jnp.float32)
    out2 = jax.block_until_ready(ex_mlp_forward(x2, w1, b1, w2, b2))
    ref2 = _reference(x2, w1, b1, w2, b2)
    assert out2.shape == (B2, S2, OUTPUT_SIZE)
    assert jnp.allclose(out2, ref2, atol=1e-5, rtol=1e-5)

    # 3) multi-step grid with a ragged trailing block: M = 372, pack = 4,
    #    Mp = 93, tm = 32 -> 3 steps; last block has 29 valid packed rows
    #    (out-of-bounds reads are don't-care, writes are bounded by Pallas)
    B3, S3 = 4, 93
    x3 = jax.random.normal(kx3, (B3, S3, INPUT_SIZE), dtype=jnp.float32)
    out3 = jax.block_until_ready(ex_mlp_forward(x3, w1, b1, w2, b2, tm=32))
    ref3 = _reference(x3, w1, b1, w2, b2)
    assert out3.shape == (B3, S3, OUTPUT_SIZE)
    assert jnp.allclose(out3, ref3, atol=1e-5, rtol=1e-5)

    print("KERNEL_OK")
</pallas_src>

<mosaic_0001>
module attributes {stable_mosaic.version = 11 : i64} {
  func.func @_mlp_kernel(%arg0: i32, %arg1: memref<4x128xf32, #tpu.memory_space<vmem>>, %arg2: memref<128x256xf32, #tpu.memory_space<vmem>>, %arg3: memref<1x256xf32, #tpu.memory_space<vmem>>, %arg4: memref<256x8xf32, #tpu.memory_space<vmem>>, %arg5: memref<1x8xf32, #tpu.memory_space<vmem>>, %arg6: memref<4x8xf32, #tpu.memory_space<vmem>>) attributes {dimension_semantics = [#tpu.dimension_semantics<parallel>], iteration_bounds = array<i64: 1>, scalar_prefetch = 0 : i64, scratch_operands = 0 : i64, tpu.core_type = #tpu.core_type<tc>, window_params = [{transform_indices = @transform_0, window_bounds = array<i64: 4, 128>}, {pipeline_mode = #tpu.pipeline_mode<synchronous>, transform_indices = @transform_1, window_bounds = array<i64: 128, 256>}, {pipeline_mode = #tpu.pipeline_mode<synchronous>, transform_indices = @transform_2, window_bounds = array<i64: 1, 256>}, {pipeline_mode = #tpu.pipeline_mode<synchronous>, transform_indices = @transform_3, window_bounds = array<i64: 256, 8>}, {pipeline_mode = #tpu.pipeline_mode<synchronous>, transform_indices = @transform_4, window_bounds = array<i64: 1, 8>}, {transform_indices = @transform_5, window_bounds = array<i64: 4, 8>}]} {
    %c0 = arith.constant 0 : index
    %c0_0 = arith.constant 0 : index
    %0 = vector.load %arg1[%c0, %c0_0] : memref<4x128xf32, #tpu.memory_space<vmem>>, vector<4x128xf32>
    %c0_1 = arith.constant 0 : index
    %c0_2 = arith.constant 0 : index
    %1 = vector.load %arg2[%c0_1, %c0_2] : memref<128x256xf32, #tpu.memory_space<vmem>>, vector<128x256xf32>
    %cst = arith.constant dense<0.000000e+00> : vector<4x256xf32>
    %2 = tpu.matmul %0, %1, %cst {dimension_numbers = #tpu.dot_dimension_numbers<[1], [0], [0], [1], [0, 0, 1, 1], [], []>} : vector<4x128xf32>, vector<128x256xf32>, vector<4x256xf32> -> vector<4x256xf32>
    %c0_3 = arith.constant 0 : index
    %c0_4 = arith.constant 0 : index
    %3 = vector.load %arg3[%c0_3, %c0_4] : memref<1x256xf32, #tpu.memory_space<vmem>>, vector<1x256xf32>
    %4 = vector.broadcast %3 : vector<1x256xf32> to vector<4x256xf32>
    %5 = arith.addf %2, %4 : vector<4x256xf32>
    %cst_5 = arith.constant 0.000000e+00 : f32
    %6 = vector.broadcast %cst_5 : f32 to vector<4x256xf32>
    %7 = arith.maximumf %5, %6 : vector<4x256xf32>
    %c0_6 = arith.constant 0 : index
    %c0_7 = arith.constant 0 : index
    %8 = vector.load %arg4[%c0_6, %c0_7] : memref<256x8xf32, #tpu.memory_space<vmem>>, vector<256x8xf32>
    %cst_8 = arith.constant dense<0.000000e+00> : vector<4x8xf32>
    %9 = tpu.matmul %7, %8, %cst_8 {dimension_numbers = #tpu.dot_dimension_numbers<[1], [0], [0], [1], [0, 0, 1, 1], [], []>} : vector<4x256xf32>, vector<256x8xf32>, vector<4x8xf32> -> vector<4x8xf32>
    %c0_9 = arith.constant 0 : index
    %c0_10 = arith.constant 0 : index
    %10 = vector.load %arg5[%c0_9, %c0_10] : memref<1x8xf32, #tpu.memory_space<vmem>>, vector<1x8xf32>
    %11 = vector.broadcast %10 : vector<1x8xf32> to vector<4x8xf32>
    %12 = arith.addf %9, %11 : vector<4x8xf32>
    %c0_11 = arith.constant 0 : index
    %c0_12 = arith.constant 0 : index
    %13 = vector.load %arg6[%c0_11, %c0_12] : memref<4x8xf32, #tpu.memory_space<vmem>>, vector<4x8xf32>
    tpu.vector_store %arg6[%c0_11, %c0_12], %12 {strides = array<i32>} : memref<4x8xf32, #tpu.memory_space<vmem>>, vector<4x8xf32>,
    return
  }
  func.func @transform_0(%arg0: i32) -> (i32, i32) {
    %c0_i32 = arith.constant 0 : i32
    %c0_i32_0 = arith.constant 0 : i32
    return %arg0, %c0_i32 : i32, i32
  }
  func.func @transform_1(%arg0: i32) -> (i32, i32) {
    %c0_i32 = arith.constant 0 : i32
    %c0_i32_0 = arith.constant 0 : i32
    %c0_i32_1 = arith.constant 0 : i32
    return %c0_i32, %c0_i32_0 : i32, i32
  }
  func.func @transform_2(%arg0: i32) -> (i32, i32) {
    %c0_i32 = arith.constant 0 : i32
    %c0_i32_0 = arith.constant 0 : i32
    %c0_i32_1 = arith.constant 0 : i32
    return %c0_i32, %c0_i32_0 : i32, i32
  }
  func.func @transform_3(%arg0: i32) -> (i32, i32) {
    %c0_i32 = arith.constant 0 : i32
    %c0_i32_0 = arith.constant 0 : i32
    %c0_i32_1 = arith.constant 0 : i32
    return %c0_i32, %c0_i32_0 : i32, i32
  }
  func.func @transform_4(%arg0: i32) -> (i32, i32) {
    %c0_i32 = arith.constant 0 : i32
    %c0_i32_0 = arith.constant 0 : i32
    %c0_i32_1 = arith.constant 0 : i32
    return %c0_i32, %c0_i32_0 : i32, i32
  }
  func.func @transform_5(%arg0: i32) -> (i32, i32) {
    %c0_i32 = arith.constant 0 : i32
    %c0_i32_0 = arith.constant 0 : i32
    return %arg0, %c0_i32 : i32, i32
  }
}

</mosaic_0001>

<llo_original>
// kernel: tpu_custom_call.1
$region0: #{tpu_custom_call.1}
  #allocation0 [shape = 'u32[]', space=smem, size = 0x4, offset = 0x4, fixed_abs, tag = 'smem constant byte address 0x4 - core index']
  #allocation1 [shape = 'u32[144,128]{1,0:T(1,128)}', space=vmem, size = 0x12000, scoped, tag = 'internal scratch']
  %s0 = inlined_call_operand.vmem [shape: f32[4,128], index: 0, kind: input, shape index: {}]
  %s1 = inlined_call_operand.vmem [shape: f32[128,256], index: 1, kind: input, shape index: {}]
  %s2 = inlined_call_operand.vmem [shape: f32[1,256], index: 2, kind: input, shape index: {}]
  %s3 = inlined_call_operand.vmem [shape: f32[256,8], index: 3, kind: input, shape index: {}]
  %s4 = inlined_call_operand.vmem [shape: f32[1,8], index: 4, kind: input, shape index: {}]
  %s5 = inlined_call_operand.hbm [shape: f32[4,8], index: 5, kind: output, shape index: {}]
  %s6 = sld [smem:[#allocation0]]
  $region30: #{tpu_custom_call.1} parent=0
    _
  %s8 = ssub.s32 1, %s6
  %s9 = scalar_select 0, %s8, %s6
  $region1: #{tpu_custom_call.1} parent=0
    #allocation2 [shape = 'u8[2048]{0}', space=vmem, size = 0x800, scoped, tag = 'output window, operand 0, single buffered']
    #allocation3 [shape = 's32[1]{0}', space=sflag, size = 0x4, scoped, tag = 'scoped memory for tpu_custom_call.1']
    %10 = vsyncpa [#allocation3], 0
    // Predicated region
    $region2: #{tpu_custom_call.1} parent=1 // pred_check
      _
    $region3: #{tpu_custom_call.1} parent=1 // pred_check_branch
      %12 = sbr.rel (0) target = $region5
    $region4: #{tpu_custom_call.1} parent=1 // pred_region
      _
    $region5: #{tpu_custom_call.1} parent=1 // pred_fallthru
      _
    // Predicated region
    $region6: #{tpu_custom_call.1} parent=1 // pred_check
      _
    $region7: #{tpu_custom_call.1} parent=1 // pred_check_branch
      %14 = sbr.rel (0) target = $region9
    $region8: #{tpu_custom_call.1} parent=1 // pred_region
      _
    $region9: #{tpu_custom_call.1} parent=1 // pred_fallthru
      _
    // Predicated region
    $region10: #{tpu_custom_call.1} parent=1 // pred_check
      _
    $region11: #{tpu_custom_call.1} parent=1 // pred_check_branch
      %16 = sbr.rel (0) target = $region13
    $region12: #{tpu_custom_call.1} parent=1 // pred_region
      _
    $region13: #{tpu_custom_call.1} parent=1 // pred_fallthru
      _
    // Predicated region
    $region14: #{tpu_custom_call.1} parent=1 // pred_check
      _
    $region15: #{tpu_custom_call.1} parent=1 // pred_check_branch
      %18 = sbr.rel (0) target = $region17
    $region16: #{tpu_custom_call.1} parent=1 // pred_region
      _
    $region17: #{tpu_custom_call.1} parent=1 // pred_fallthru
      _
    // Predicated region
    $region18: #{tpu_custom_call.1} parent=1 // pred_check
      _
    $region19: #{tpu_custom_call.1} parent=1 // pred_check_branch
      %20 = sbr.rel (0) target = $region21
    $region20: #{tpu_custom_call.1} parent=1 // pred_region
      _
    $region21: #{tpu_custom_call.1} parent=1 // pred_fallthru
      _
    %v21 = vld [vmem:[%s0] sm:$0xf]
    %v22 = vld [vmem:[%s1] sm:$0xff]
    %v23 = vld [vmem:[%s1 + $0x8] sm:$0xff]
    %v24 = vld [vmem:[%s1 + $0x10] sm:$0xff]
    %v25 = vld [vmem:[%s1 + $0x18] sm:$0xff]
    %v26 = vld [vmem:[%s1 + $0x20] sm:$0xff]
    %v27 = vld [vmem:[%s1 + $0x28] sm:$0xff]
    %v28 = vld [vmem:[%s1 + $0x30] sm:$0xff]
    %v29 = vld [vmem:[%s1 + $0x38] sm:$0xff]
    %v30 = vld [vmem:[%s1 + $0x40] sm:$0xff]
    %v31 = vld [vmem:[%s1 + $0x48] sm:$0xff]
    %v32 = vld [vmem:[%s1 + $0x50] sm:$0xff]
    %v33 = vld [vmem:[%s1 + $0x58] sm:$0xff]
    %v34 = vld [vmem:[%s1 + $0x60] sm:$0xff]
    %v35 = vld [vmem:[%s1 + $0x68] sm:$0xff]
    %v36 = vld [vmem:[%s1 + $0x70] sm:$0xff]
    %v37 = vld [vmem:[%s1 + $0x78] sm:$0xff]
    %v38 = vld [vmem:[%s1 + $0x80] sm:$0xff]
    %v39 = vld [vmem:[%s1 + $0x88] sm:$0xff]
    %v40 = vld [vmem:[%s1 + $0x90] sm:$0xff]
    %v41 = vld [vmem:[%s1 + $0x98] sm:$0xff]
    %v42 = vld [vmem:[%s1 + $0xa0] sm:$0xff]
    %v43 = vld [vmem:[%s1 + $0xa8] sm:$0xff]
    %v44 = vld [vmem:[%s1 + $0xb0] sm:$0xff]
    %v45 = vld [vmem:[%s1 + $0xb8] sm:$0xff]
    %v46 = vld [vmem:[%s1 + $0xc0] sm:$0xff]
    %v47 = vld [vmem:[%s1 + $0xc8] sm:$0xff]
    %v48 = vld [vmem:[%s1 + $0xd0] sm:$0xff]
    %v49 = vld [vmem:[%s1 + $0xd8] sm:$0xff]
    %v50 = vld [vmem:[%s1 + $0xe0] sm:$0xff]
    %v51 = vld [vmem:[%s1 + $0xe8] sm:$0xff]
    %v52 = vld [vmem:[%s1 + $0xf0] sm:$0xff]
    %v53 = vld [vmem:[%s1 + $0xf8] sm:$0xff]
    %v54 = vld [vmem:[%s2] sm:$0x3]
    %v56 = vlaneseq
    %v57 = vshrl.u32 %v56, 7
    %v58 = vsub.s32 0, %v57
    %v59 = vrot.slane %v54, %v58
    %v60 = vlaneseq
    %v61 = vshrl.u32 %v60, 7
    %v62 = vsub.s32 1, %v61
    %v63 = vrot.slane %v54, %v62
    %66 = vmatprep.subr.mxu0 %v23
    %67 = vmatpush1.msra.mxu0 %v22
    %68 = vmatprep.subr.mxu0 %v25
    %69 = vmatpush1.msra.mxu0 %v24
    %70 = vmatprep.subr.mxu0 %v27
    %71 = vmatpush1.msra.mxu0 %v26
    %72 = vmatprep.subr.mxu0 %v29
    %73 = vmatpush1.msra.mxu0 %v28
    %74 = vmatprep.subr.mxu0 %v31
    %75 = vmatpush1.msra.mxu0 %v30
    %76 = vmatprep.subr.mxu0 %v33
    %77 = vmatpush1.msra.mxu0 %v32
    %78 = vmatprep.subr.mxu0 %v35
    %79 = vmatpush1.msra.mxu0 %v34
    %80 = vmatprep.subr.mxu0 %v37
    %81 = vmatpush1.msra.mxu0 %v36
    %82 = vmatprep.subr.mxu0 %v39
    %83 = vmatpush1.msra.mxu0 %v38
    %84 = vmatprep.subr.mxu0 %v41
    %85 = vmatpush1.msra.mxu0 %v40
    %86 = vmatprep.subr.mxu0 %v43
    %87 = vmatpush1.msra.mxu0 %v42
    %88 = vmatprep.subr.mxu0 %v45
    %89 = vmatpush1.msra.mxu0 %v44
    %90 = vmatprep.subr.mxu0 %v47
    %91 = vmatpush1.msra.mxu0 %v46
    %92 = vmatprep.subr.mxu0 %v49
    %93 = vmatpush1.msra.mxu0 %v48
    %94 = vmatprep.subr.mxu0 %v51
    %95 = vmatpush1.msra.mxu0 %v50
    %96 = vmatprep.subr.mxu0 %v53
    %97 = vmatpush1.msra.mxu0 %v52
    %98 = vmatprep.subr.mxu0 0.0
    %99 = vmatpush1.msra.mxu0 0.0
    %100 = vmatprep.subr.mxu0 0.0
    %101 = vmatpush1.msra.mxu0 0.0
    %102 = vmatprep.subr.mxu0 0.0
    %103 = vmatpush1.msra.mxu0 0.0
    %104 = vmatprep.subr.mxu0 0.0
    %105 = vmatpush1.msra.mxu0 0.0
    %106 = vmatprep.subr.mxu0 0.0
    %107 = vmatpush1.msra.mxu0 0.0
    %108 = vmatprep.subr.mxu0 0.0
    %109 = vmatpush1.msra.mxu0 0.0
    %110 = vmatprep.subr.mxu0 0.0
    %111 = vmatpush1.msra.mxu0 0.0
    %112 = vmatprep.subr.mxu0 0.0
    %113 = vmatpush1.msra.mxu0 0.0
    %114 = vmatprep.subr.mxu0 0.0
    %115 = vmatpush1.msra.mxu0 0.0
    %116 = vmatprep.subr.mxu0 0.0
    %117 = vmatpush1.msra.mxu0 0.0
    %118 = vmatprep.subr.mxu0 0.0
    %119 = vmatpush1.msra.mxu0 0.0
    %120 = vmatprep.subr.mxu0 0.0
    %121 = vmatpush1.msra.mxu0 0.0
    %122 = vmatprep.subr.mxu0 0.0
    %123 = vmatpush1.msra.mxu0 0.0
    %124 = vmatprep.subr.mxu0 0.0
    %125 = vmatpush1.msra.mxu0 0.0
    %126 = vmatprep.subr.mxu0 0.0
    %127 = vmatpush1.msra.mxu0 0.0
    %128 = vmatprep.subr.mxu0 0.0
    %129 = vmatpush1.msra.mxu0 0.0
    %130 = vmatprep.mubr.f32.mxu0 0.0
    %131 = vmatmul.mubr.f32.gmra.mrb[0].mxu0 %v21
    %v132 = vpop.f32.mrb[0].mxu0
    %v133 = vadd.f32 %v59, %v132
    %v134 = vpop.f32.mrb[0].mxu0
    %v135 = vadd.f32 %v63, %v134
    %136 = vdwg.mxu0
    %v137 = vmax.f32 %v133, 0.0
    %v138 = vmax.f32 %v135, 0.0
    %v139 = vld [vmem:[%s3] sm:$0xff]
    %v140 = vld [vmem:[%s3 + $0x8] sm:$0xff]
    %v141 = vld [vmem:[%s3 + $0x10] sm:$0xff]
    %v142 = vld [vmem:[%s3 + $0x18] sm:$0xff]
    %v143 = vld [vmem:[%s3 + $0x20] sm:$0xff]
    %v144 = vld [vmem:[%s3 + $0x28] sm:$0xff]
    %v145 = vld [vmem:[%s3 + $0x30] sm:$0xff]
    %v146 = vld [vmem:[%s3 + $0x38] sm:$0xff]
    %v147 = vld [vmem:[%s3 + $0x40] sm:$0xff]
    %v148 = vld [vmem:[%s3 + $0x48] sm:$0xff]
    %v149 = vld [vmem:[%s3 + $0x50] sm:$0xff]
    %v150 = vld [vmem:[%s3 + $0x58] sm:$0xff]
    %v151 = vld [vmem:[%s3 + $0x60] sm:$0xff]
    %v152 = vld [vmem:[%s3 + $0x68] sm:$0xff]
    %v153 = vld [vmem:[%s3 + $0x70] sm:$0xff]
    %v154 = vld [vmem:[%s3 + $0x78] sm:$0xff]
    %v155 = vld [vmem:[%s3 + $0x80] sm:$0xff]
    %v156 = vld [vmem:[%s3 + $0x88] sm:$0xff]
    %v157 = vld [vmem:[%s3 + $0x90] sm:$0xff]
    %v158 = vld [vmem:[%s3 + $0x98] sm:$0xff]
    %v159 = vld [vmem:[%s3 + $0xa0] sm:$0xff]
    %v160 = vld [vmem:[%s3 + $0xa8] sm:$0xff]
    %v161 = vld [vmem:[%s3 + $0xb0] sm:$0xff]
    %v162 = vld [vmem:[%s3 + $0xb8] sm:$0xff]
    %v163 = vld [vmem:[%s3 + $0xc0] sm:$0xff]
    %v164 = vld [vmem:[%s3 + $0xc8] sm:$0xff]
    %v165 = vld [vmem:[%s3 + $0xd0] sm:$0xff]
    %v166 = vld [vmem:[%s3 + $0xd8] sm:$0xff]
    %v167 = vld [vmem:[%s3 + $0xe0] sm:$0xff]
    %v168 = vld [vmem:[%s3 + $0xe8] sm:$0xff]
    %v169 = vld [vmem:[%s3 + $0xf0] sm:$0xff]
    %v170 = vld [vmem:[%s3 + $0xf8] sm:$0xff]
    %v171 = vld [vmem:[%s4] sm:$0x1]
    %v173 = vlaneseq
    %v174 = vshrl.u32 %v173, 7
    %v175 = vsub.s32 0, %v174
    %v176 = vrot.slane %v171, %v175
    %178 = vmatprep.subr.mxu0 0.0
    %179 = vmatpush1.msra.mxu0 %v139
    %180 = vmatprep.subr.mxu0 0.0
    %181 = vmatpush1.msra.mxu0 %v140
    %182 = vmatprep.subr.mxu0 0.0
    %183 = vmatpush1.msra.mxu0 %v141
    %184 = vmatprep.subr.mxu0 0.0
    %185 = vmatpush1.msra.mxu0 %v142
    %186 = vmatprep.subr.mxu0 0.0
    %187 = vmatpush1.msra.mxu0 %v143
    %188 = vmatprep.subr.mxu0 0.0
    %189 = vmatpush1.msra.mxu0 %v144
    %190 = vmatprep.subr.mxu0 0.0
    %191 = vmatpush1.msra.mxu0 %v145
    %192 = vmatprep.subr.mxu0 0.0
    %193 = vmatpush1.msra.mxu0 %v146
    %194 = vmatprep.subr.mxu0 0.0
    %195 = vmatpush1.msra.mxu0 %v147
    %196 = vmatprep.subr.mxu0 0.0
    %197 = vmatpush1.msra.mxu0 %v148
    %198 = vmatprep.subr.mxu0 0.0
    %199 = vmatpush1.msra.mxu0 %v149
    %200 = vmatprep.subr.mxu0 0.0
    %201 = vmatpush1.msra.mxu0 %v150
    %202 = vmatprep.subr.mxu0 0.0
    %203 = vmatpush1.msra.mxu0 %v151
    %204 = vmatprep.subr.mxu0 0.0
    %205 = vmatpush1.msra.mxu0 %v152
    %206 = vmatprep.subr.mxu0 0.0
    %207 = vmatpush1.msra.mxu0 %v153
    %208 = vmatprep.subr.mxu0 0.0
    %209 = vmatpush1.msra.mxu0 %v154
    %210 = vmatprep.subr.mxu0 0.0
    %211 = vmatpush1.msra.mxu0 %v155
    %212 = vmatprep.subr.mxu0 0.0
    %213 = vmatpush1.msra.mxu0 %v156
    %214 = vmatprep.subr.mxu0 0.0
    %215 = vmatpush1.msra.mxu0 %v157
    %216 = vmatprep.subr.mxu0 0.0
    %217 = vmatpush1.msra.mxu0 %v158
    %218 = vmatprep.subr.mxu0 0.0
    %219 = vmatpush1.msra.mxu0 %v159
    %220 = vmatprep.subr.mxu0 0.0
    %221 = vmatpush1.msra.mxu0 %v160
    %222 = vmatprep.subr.mxu0 0.0
    %223 = vmatpush1.msra.mxu0 %v161
    %224 = vmatprep.subr.mxu0 0.0
    %225 = vmatpush1.msra.mxu0 %v162
    %226 = vmatprep.subr.mxu0 0.0
    %227 = vmatpush1.msra.mxu0 %v163
    %228 = vmatprep.subr.mxu0 0.0
    %229 = vmatpush1.msra.mxu0 %v164
    %230 = vmatprep.subr.mxu0 0.0
    %231 = vmatpush1.msra.mxu0 %v165
    %232 = vmatprep.subr.mxu0 0.0
    %233 = vmatpush1.msra.mxu0 %v166
    %234 = vmatprep.subr.mxu0 0.0
    %235 = vmatpush1.msra.mxu0 %v167
    %236 = vmatprep.subr.mxu0 0.0
    %237 = vmatpush1.msra.mxu0 %v168
    %238 = vmatprep.subr.mxu0 0.0
    %239 = vmatpush1.msra.mxu0 %v169
    %240 = vmatprep.subr.mxu0 0.0
    %241 = vmatpush1.msra.mxu0 %v170
    %242 = vmatprep.mubr.f32.mxu0 %v138
    %243 = vmatmul.mubr.f32.gmra.mrb[0].mxu0 %v137
    %v244 = vpop.f32.mrb[0].mxu0
    %v245 = vadd.f32 %v176, %v244
    %v246 = vpop.f32.mrb[0].mxu0
    %247 = vdwg.mxu0
    %vm248 = vcmask 60416
    %249 = vst.msk [vmem:[#allocation2] sm:$0xf] %vm248, %v245
    // Predicated region
    $region22: #{tpu_custom_call.1} parent=1 // pred_check
      _
    $region23: #{tpu_custom_call.1} parent=1 // pred_check_branch
      %251 = sbr.rel (0) target = $region25
    $region24: #{tpu_custom_call.1} parent=1 // pred_region
      %s253 = ssub.s32 64, 64
      %254 = vsyncadd [#allocation3], %s253
      %s256 = sshll.u32 [#allocation2], 4
      %s257 = int_to_ptr.vmem [resolvable:$true] %s256
      %259 = dma.vmem_to_hbm [thread:$0]  %s257, 64, %s5, [#allocation3]
    $region25: #{tpu_custom_call.1} parent=1 // pred_fallthru
      _
    // Predicated region
    $region26: #{tpu_custom_call.1} parent=1 // pred_check
      _
    $region27: #{tpu_custom_call.1} parent=1 // pred_check_branch
      %261 = sbr.rel (0) target = $region29
    $region28: #{tpu_custom_call.1} parent=1 // pred_region
      %262 = dma.done [#allocation3], 64
    $region29: #{tpu_custom_call.1} parent=1 // pred_fallthru
      _
    %263 = vsyncpa [#allocation3], 1

</llo_original>
